<compile_context>
chip_gen: v5e
topology: v5e:2x2
jax: 0.10.0
libtpu: 0.0.40
codegen_flags: <defaults>
</compile_context>

<pallas_src>
import jax
import jax.numpy as jnp
from jax.experimental import pallas as pl
from jax.experimental.pallas import tpu as pltpu


def _decoder_gru_kernel(x_ref, h0_ref, wg_ref, bg_ref, wt_ref, bt_ref,
                        out_ref, hp_ref):
    """One GRU step + output projection per grid iteration (weights resident).

    x_ref:   (1, B, I+H)  input slab for this step, zero-padded in cols [I:]
    h0_ref:  (B, I+H)     initial hidden slab [0_I | h0] (used only at t == 0)
    wg_ref:  (I+H, 6H)    block-diag fused gate weight [[W_ih^T, 0],[0, W_hh^T]]
    bg_ref:  (1, 6H)      [b_ih | b_hh]
    wt_ref:  (H, P)       tail weight  [0_I | I_H | W_out^T | 0 pad]
    bt_ref:  (1, P)       tail bias    [0          | b_out   | 0    ]
    out_ref: (1, B, P)    packed per-step output [0_I | h_new | logits | 0]
    hp_ref:  (B, I+H)     VMEM scratch carrying [0_I | h] across steps
    """
    t = pl.program_id(0)
    H = wt_ref.shape[0]
    IH = x_ref.shape[-1]
    I = IH - H

    @pl.when(t == 0)
    def _():
        hp_ref[...] = h0_ref[...]                      # [0_I | h0]

    # Lane-concat [x | h] via a plain VPU add of complementary zero-padded slabs.
    xh = x_ref[0] + hp_ref[...]                        # (B, I+H)
    h = xh[:, I:]                                      # previous hidden

    # Fused gate matmul: single MXU pass -> [gi_r gi_z gi_n | gh_r gh_z gh_n].
    g = jnp.dot(xh, wg_ref[...], preferred_element_type=jnp.float32) + bg_ref[...]
    gi = g[:, :3 * H]
    gh = g[:, 3 * H:]

    # r and z computed with one sigmoid over the contiguous [0:2H] slice.
    rz = jax.nn.sigmoid(gi[:, :2 * H] + gh[:, :2 * H])
    r = rz[:, :H]
    z = rz[:, H:]
    n = jnp.tanh(gi[:, 2 * H:] + r * gh[:, 2 * H:])
    h_new = (1.0 - z) * n + z * h

    # Tail matmul fuses output projection + identity passthrough of h_new into
    # one lane-dense (multiple-of-128) packed row -> single unmasked store.
    packed = (jnp.dot(h_new, wt_ref[...], preferred_element_type=jnp.float32)
              + bt_ref[...])
    hp_ref[...] = packed[:, :IH]                       # carry [0_I | h_new]
    out_ref[0] = packed


def prepare_params(params):
    """One-time param preprocessing (hoists transposes/fusion off the hot path)."""
    w_ih = params["w_ih"]                 # (3H, I)   nn.GRU weight_ih_l0
    w_hh = params["w_hh"]                 # (3H, H)   nn.GRU weight_hh_l0
    w_out = params["w_out"]               # (V, H)    nn.Linear weight
    H3, I = w_ih.shape
    H = w_hh.shape[1]
    V = w_out.shape[0]
    IH = I + H

    # Fused block-diagonal gate weight: [x | h] @ wg -> [gi | gh] (B, 6H).
    wg = jnp.zeros((IH, 2 * H3), jnp.float32)
    wg = wg.at[:I, :H3].set(w_ih.T.astype(jnp.float32))
    wg = wg.at[I:, H3:].set(w_hh.T.astype(jnp.float32))
    bg = jnp.concatenate([params["b_ih"], params["b_hh"]]).astype(jnp.float32)[None, :]

    # Tail weight: h_new @ wt + bt -> packed [0_I | h_new | logits | 0 pad].
    P = ((I + H + V + 127) // 128) * 128
    wt = jnp.zeros((H, P), jnp.float32)
    wt = wt.at[:, I:I + H].set(jnp.eye(H, dtype=jnp.float32))
    wt = wt.at[:, I + H:I + H + V].set(w_out.T.astype(jnp.float32))
    bt = jnp.zeros((1, P), jnp.float32)
    bt = bt.at[0, I + H:I + H + V].set(params["b_out"].astype(jnp.float32))

    return {"wg": wg, "bg": bg, "wt": wt, "bt": bt,
            "I": I, "H": H, "V": V, "P": P}


def decoder_forward_sequence(x_seq, hidden, prep):
    """T GRU steps + output projections inside ONE pallas_call.

    x_seq:  (T, B, I)  per-step inputs (precomputed embeddings)
    hidden: (1, B, H)  initial hidden state
    Returns (logits_seq (T, B, V), final hidden (1, B, H)).
    """
    I, H, V, P = prep["I"], prep["H"], prep["V"], prep["P"]
    T, B, _ = x_seq.shape
    IH = I + H

    # Zero-pad so that [x | 0_H] + [0_I | h] == [x | h] (lane concat via add).
    x_pad = jnp.concatenate(
        [x_seq.astype(jnp.float32), jnp.zeros((T, B, H), jnp.float32)], axis=-1)
    h0_slab = jnp.concatenate(
        [jnp.zeros((B, I), jnp.float32),
         jnp.reshape(hidden, (B, H)).astype(jnp.float32)], axis=-1)

    out = pl.pallas_call(
        _decoder_gru_kernel,
        out_shape=jax.ShapeDtypeStruct((T, B, P), jnp.float32),
        grid_spec=pltpu.PrefetchScalarGridSpec(
            num_scalar_prefetch=0,
            grid=(T,),
            in_specs=[
                pl.BlockSpec((1, B, IH), lambda t: (t, 0, 0)),   # x slab per step
                pl.BlockSpec((B, IH), lambda t: (0, 0)),          # h0 slab
                pl.BlockSpec((IH, prep["wg"].shape[1]), lambda t: (0, 0)),  # resident
                pl.BlockSpec((1, prep["bg"].shape[1]), lambda t: (0, 0)),   # resident
                pl.BlockSpec((H, P), lambda t: (0, 0)),            # resident
                pl.BlockSpec((1, P), lambda t: (0, 0)),            # resident
            ],
            out_specs=pl.BlockSpec((1, B, P), lambda t: (t, 0, 0)),
            scratch_shapes=[pltpu.VMEM((B, IH), jnp.float32)],     # hidden carry
        ),
        compiler_params=pltpu.CompilerParams(
            # recurrence over T -> sequential axis
            dimension_semantics=("arbitrary",)),
    )(x_pad, h0_slab, prep["wg"], prep["bg"], prep["wt"], prep["bt"])

    logits_seq = out[:, :, I + H:I + H + V]
    h_final = out[-1, :, I:I + H]
    return logits_seq, h_final[None]


def decoder_forward(inp, hidden, encoder_outputs, prep, *, batch_size):
    """Mirrors Decoder.forward(input, hidden, encoder_outputs) — one GRU step."""
    del encoder_outputs  # unused by the PyTorch forward as well
    # TODO(synk): nn.Dropout in train mode is stochastic; identity (eval) here.
    x_seq = jnp.reshape(inp, (1, batch_size, prep["I"]))
    logits_seq, h_new = decoder_forward_sequence(x_seq, hidden, prep)
    return logits_seq[0], h_new


def init_params(key, input_size, hidden_size, vocab_size):
    """Deterministic synthetic parameters matching nn.GRU / nn.Linear shapes."""
    ks = jax.random.split(key, 6)
    s = 0.1
    return {
        "w_ih": s * jax.random.normal(ks[0], (3 * hidden_size, input_size), jnp.float32),
        "w_hh": s * jax.random.normal(ks[1], (3 * hidden_size, hidden_size), jnp.float32),
        "b_ih": s * jax.random.normal(ks[2], (3 * hidden_size,), jnp.float32),
        "b_hh": s * jax.random.normal(ks[3], (3 * hidden_size,), jnp.float32),
        "w_out": s * jax.random.normal(ks[4], (vocab_size, hidden_size), jnp.float32),
        "b_out": s * jax.random.normal(ks[5], (vocab_size,), jnp.float32),
    }


def _reference_step(x, h, params):
    """Pure-JAX single GRU step + Linear (PyTorch semantics)."""
    gi = x @ params["w_ih"].T + params["b_ih"]
    gh = h @ params["w_hh"].T + params["b_hh"]
    H = h.shape[-1]
    r = jax.nn.sigmoid(gi[:, :H] + gh[:, :H])
    z = jax.nn.sigmoid(gi[:, H:2 * H] + gh[:, H:2 * H])
    n = jnp.tanh(gi[:, 2 * H:] + r * gh[:, 2 * H:])
    h_new = (1.0 - z) * n + z * h
    logits = h_new @ params["w_out"].T + params["b_out"]
    return logits, h_new


if __name__ == "__main__":
    input_size = 32
    hidden_size = 32
    vocab_size = 64
    max_length = 8     # only used by the (unused) attention layers
    batch_size = 2
    seq_len = 8        # demonstrates the T-step decode loop folded into one call

    key = jax.random.PRNGKey(0)
    k_param, k_in, k_hid, k_enc, k_seq = jax.random.split(key, 5)

    params = init_params(k_param, input_size, hidden_size, vocab_size)
    prep = prepare_params(params)   # one-time: transposes/fusion hoisted here

    inp = jax.random.normal(k_in, (1, batch_size, input_size), jnp.float32)
    hidden = jax.random.normal(k_hid, (1, batch_size, hidden_size), jnp.float32)
    encoder_outputs = jax.random.normal(
        k_enc, (max_length, batch_size, hidden_size), jnp.float32)  # unused

    # --- single step: exactly Decoder.forward ---
    logits, new_hidden = decoder_forward(
        inp, hidden, encoder_outputs, prep, batch_size=batch_size)
    jax.block_until_ready((logits, new_hidden))

    ref_logits, ref_h = _reference_step(
        jnp.reshape(inp, (batch_size, input_size)),
        jnp.reshape(hidden, (batch_size, hidden_size)), params)
    assert logits.shape == (batch_size, vocab_size)
    assert new_hidden.shape == (1, batch_size, hidden_size)
    assert jnp.allclose(logits, ref_logits, atol=1e-5, rtol=1e-5)
    assert jnp.allclose(new_hidden[0], ref_h, atol=1e-5, rtol=1e-5)

    # --- T-step decode loop in a single pallas_call (weights stay in VMEM) ---
    x_seq = jax.random.normal(k_seq, (seq_len, batch_size, input_size), jnp.float32)
    seq_logits, seq_hidden = decoder_forward_sequence(x_seq, hidden, prep)
    jax.block_until_ready((seq_logits, seq_hidden))

    h = jnp.reshape(hidden, (batch_size, hidden_size))
    for t in range(seq_len):
        ref_l, h = _reference_step(x_seq[t], h, params)
        assert jnp.allclose(seq_logits[t], ref_l, atol=1e-4, rtol=1e-4)
    assert jnp.allclose(seq_hidden[0], h, atol=1e-4, rtol=1e-4)

    print("KERNEL_OK")
</pallas_src>

<mosaic_0001>
module attributes {stable_mosaic.version = 11 : i64} {
  func.func @_decoder_gru_kernel(%arg0: i32, %arg1: memref<1x2x64xf32, #tpu.memory_space<vmem>>, %arg2: memref<2x64xf32, #tpu.memory_space<vmem>>, %arg3: memref<64x192xf32, #tpu.memory_space<vmem>>, %arg4: memref<1x192xf32, #tpu.memory_space<vmem>>, %arg5: memref<32x128xf32, #tpu.memory_space<vmem>>, %arg6: memref<1x128xf32, #tpu.memory_space<vmem>>, %arg7: memref<1x2x128xf32, #tpu.memory_space<vmem>>, %arg8: memref<2x64xf32, #tpu.memory_space<vmem>>) attributes {dimension_semantics = [#tpu.dimension_semantics<arbitrary>], iteration_bounds = array<i64: 1>, scalar_prefetch = 0 : i64, scratch_operands = 1 : i64, tpu.core_type = #tpu.core_type<tc>, window_params = [{transform_indices = @transform_0, window_bounds = array<i64: 1, 2, 64>}, {pipeline_mode = #tpu.pipeline_mode<synchronous>, transform_indices = @transform_1, window_bounds = array<i64: 2, 64>}, {pipeline_mode = #tpu.pipeline_mode<synchronous>, transform_indices = @transform_2, window_bounds = array<i64: 64, 192>}, {pipeline_mode = #tpu.pipeline_mode<synchronous>, transform_indices = @transform_3, window_bounds = array<i64: 1, 192>}, {pipeline_mode = #tpu.pipeline_mode<synchronous>, transform_indices = @transform_4, window_bounds = array<i64: 32, 128>}, {pipeline_mode = #tpu.pipeline_mode<synchronous>, transform_indices = @transform_5, window_bounds = array<i64: 1, 128>}, {transform_indices = @transform_6, window_bounds = array<i64: 1, 2, 128>}]} {
    %c0_i32 = arith.constant 0 : i32
    %0 = arith.cmpi eq, %arg0, %c0_i32 : i32
    %1 = arith.extui %0 : i1 to i32
    %c0_i32_0 = arith.constant 0 : i32
    %2 = arith.cmpi ne, %1, %c0_i32_0 : i32
    scf.if %2 {
      %c0_21 = arith.constant 0 : index
      %c0_22 = arith.constant 0 : index
      %45 = vector.load %arg2[%c0_21, %c0_22] : memref<2x64xf32, #tpu.memory_space<vmem>>, vector<2x64xf32>
      %c0_23 = arith.constant 0 : index
      %c0_24 = arith.constant 0 : index
      %46 = vector.load %arg8[%c0_23, %c0_24] : memref<2x64xf32, #tpu.memory_space<vmem>>, vector<2x64xf32>
      tpu.vector_store %arg8[%c0_23, %c0_24], %45 {strides = array<i32>} : memref<2x64xf32, #tpu.memory_space<vmem>>, vector<2x64xf32>,
    } else {
    }
    %c0 = arith.constant 0 : index
    %c0_1 = arith.constant 0 : index
    %c0_2 = arith.constant 0 : index
    %3 = vector.load %arg1[%c0, %c0_1, %c0_2] : memref<1x2x64xf32, #tpu.memory_space<vmem>>, vector<1x2x64xf32>
    %4 = vector.shape_cast %3 : vector<1x2x64xf32> to vector<2x64xf32>
    %c0_3 = arith.constant 0 : index
    %c0_4 = arith.constant 0 : index
    %5 = vector.load %arg8[%c0_3, %c0_4] : memref<2x64xf32, #tpu.memory_space<vmem>>, vector<2x64xf32>
    %6 = arith.addf %4, %5 : vector<2x64xf32>
    %7 = vector.extract_strided_slice %6 {offsets = [0, 32], sizes = [2, 32], strides = [1, 1]} : vector<2x64xf32> to vector<2x32xf32>
    %c0_5 = arith.constant 0 : index
    %c0_6 = arith.constant 0 : index
    %8 = vector.load %arg3[%c0_5, %c0_6] : memref<64x192xf32, #tpu.memory_space<vmem>>, vector<64x192xf32>
    %cst = arith.constant dense<0.000000e+00> : vector<2x192xf32>
    %9 = tpu.matmul %6, %8, %cst {dimension_numbers = #tpu.dot_dimension_numbers<[1], [0], [0], [1], [0, 0, 1, 1], [], []>} : vector<2x64xf32>, vector<64x192xf32>, vector<2x192xf32> -> vector<2x192xf32>
    %c0_7 = arith.constant 0 : index
    %c0_8 = arith.constant 0 : index
    %10 = vector.load %arg4[%c0_7, %c0_8] : memref<1x192xf32, #tpu.memory_space<vmem>>, vector<1x192xf32>
    %11 = vector.broadcast %10 : vector<1x192xf32> to vector<2x192xf32>
    %12 = arith.addf %9, %11 : vector<2x192xf32>
    %13 = vector.extract_strided_slice %12 {offsets = [0, 0], sizes = [2, 96], strides = [1, 1]} : vector<2x192xf32> to vector<2x96xf32>
    %14 = vector.extract_strided_slice %12 {offsets = [0, 96], sizes = [2, 96], strides = [1, 1]} : vector<2x192xf32> to vector<2x96xf32>
    %15 = vector.extract_strided_slice %13 {offsets = [0, 0], sizes = [2, 64], strides = [1, 1]} : vector<2x96xf32> to vector<2x64xf32>
    %16 = vector.extract_strided_slice %14 {offsets = [0, 0], sizes = [2, 64], strides = [1, 1]} : vector<2x96xf32> to vector<2x64xf32>
    %17 = arith.addf %15, %16 : vector<2x64xf32>
    %18 = arith.negf %17 : vector<2x64xf32>
    %19 = math.exp %18 : vector<2x64xf32>
    %cst_9 = arith.constant 1.000000e+00 : f32
    %20 = vector.broadcast %cst_9 : f32 to vector<2x64xf32>
    %21 = arith.addf %20, %19 : vector<2x64xf32>
    %22 = arith.divf %20, %21 : vector<2x64xf32>
    %23 = vector.extract_strided_slice %22 {offsets = [0, 0], sizes = [2, 32], strides = [1, 1]} : vector<2x64xf32> to vector<2x32xf32>
    %24 = vector.extract_strided_slice %22 {offsets = [0, 32], sizes = [2, 32], strides = [1, 1]} : vector<2x64xf32> to vector<2x32xf32>
    %25 = vector.extract_strided_slice %13 {offsets = [0, 64], sizes = [2, 32], strides = [1, 1]} : vector<2x96xf32> to vector<2x32xf32>
    %26 = vector.extract_strided_slice %14 {offsets = [0, 64], sizes = [2, 32], strides = [1, 1]} : vector<2x96xf32> to vector<2x32xf32>
    %27 = arith.mulf %23, %26 : vector<2x32xf32>
    %28 = arith.addf %25, %27 : vector<2x32xf32>
    %29 = math.tanh %28 : vector<2x32xf32>
    %cst_10 = arith.constant 1.000000e+00 : f32
    %30 = vector.broadcast %cst_10 : f32 to vector<2x32xf32>
    %31 = arith.subf %30, %24 : vector<2x32xf32>
    %32 = arith.mulf %31, %29 : vector<2x32xf32>
    %33 = arith.mulf %24, %7 : vector<2x32xf32>
    %34 = arith.addf %32, %33 : vector<2x32xf32>
    %c0_11 = arith.constant 0 : index
    %c0_12 = arith.constant 0 : index
    %35 = vector.load %arg5[%c0_11, %c0_12] : memref<32x128xf32, #tpu.memory_space<vmem>>, vector<32x128xf32>
    %cst_13 = arith.constant dense<0.000000e+00> : vector<2x128xf32>
    %36 = tpu.matmul %34, %35, %cst_13 {dimension_numbers = #tpu.dot_dimension_numbers<[1], [0], [0], [1], [0, 0, 1, 1], [], []>} : vector<2x32xf32>, vector<32x128xf32>, vector<2x128xf32> -> vector<2x128xf32>
    %c0_14 = arith.constant 0 : index
    %c0_15 = arith.constant 0 : index
    %37 = vector.load %arg6[%c0_14, %c0_15] : memref<1x128xf32, #tpu.memory_space<vmem>>, vector<1x128xf32>
    %38 = vector.broadcast %37 : vector<1x128xf32> to vector<2x128xf32>
    %39 = arith.addf %36, %38 : vector<2x128xf32>
    %40 = vector.extract_strided_slice %39 {offsets = [0, 0], sizes = [2, 64], strides = [1, 1]} : vector<2x128xf32> to vector<2x64xf32>
    %c0_16 = arith.constant 0 : index
    %c0_17 = arith.constant 0 : index
    %41 = vector.load %arg8[%c0_16, %c0_17] : memref<2x64xf32, #tpu.memory_space<vmem>>, vector<2x64xf32>
    tpu.vector_store %arg8[%c0_16, %c0_17], %40 {strides = array<i32>} : memref<2x64xf32, #tpu.memory_space<vmem>>, vector<2x64xf32>,
    %c0_18 = arith.constant 0 : index
    %c0_19 = arith.constant 0 : index
    %c0_20 = arith.constant 0 : index
    %42 = vector.load %arg7[%c0_18, %c0_19, %c0_20] : memref<1x2x128xf32, #tpu.memory_space<vmem>>, vector<1x2x128xf32>
    %43 = vector.shape_cast %42 : vector<1x2x128xf32> to vector<2x128xf32>
    %44 = vector.shape_cast %39 : vector<2x128xf32> to vector<1x2x128xf32>
    tpu.vector_store %arg7[%c0_18, %c0_19, %c0_20], %44 {strides = array<i32>} : memref<1x2x128xf32, #tpu.memory_space<vmem>>, vector<1x2x128xf32>,
    return
  }
  func.func @transform_0(%arg0: i32) -> (i32, i32, i32) {
    %c0_i32 = arith.constant 0 : i32
    %c0_i32_0 = arith.constant 0 : i32
    %c0_i32_1 = arith.constant 0 : i32
    return %arg0, %c0_i32, %c0_i32_0 : i32, i32, i32
  }
  func.func @transform_1(%arg0: i32) -> (i32, i32) {
    %c0_i32 = arith.constant 0 : i32
    %c0_i32_0 = arith.constant 0 : i32
    %c0_i32_1 = arith.constant 0 : i32
    return %c0_i32, %c0_i32_0 : i32, i32
  }
  func.func @transform_2(%arg0: i32) -> (i32, i32) {
    %c0_i32 = arith.constant 0 : i32
    %c0_i32_0 = arith.constant 0 : i32
    %c0_i32_1 = arith.constant 0 : i32
    return %c0_i32, %c0_i32_0 : i32, i32
  }
  func.func @transform_3(%arg0: i32) -> (i32, i32) {
    %c0_i32 = arith.constant 0 : i32
    %c0_i32_0 = arith.constant 0 : i32
    %c0_i32_1 = arith.constant 0 : i32
    return %c0_i32, %c0_i32_0 : i32, i32
  }
  func.func @transform_4(%arg0: i32) -> (i32, i32) {
    %c0_i32 = arith.constant 0 : i32
    %c0_i32_0 = arith.constant 0 : i32
    %c0_i32_1 = arith.constant 0 : i32
    return %c0_i32, %c0_i32_0 : i32, i32
  }
  func.func @transform_5(%arg0: i32) -> (i32, i32) {
    %c0_i32 = arith.constant 0 : i32
    %c0_i32_0 = arith.constant 0 : i32
    %c0_i32_1 = arith.constant 0 : i32
    return %c0_i32, %c0_i32_0 : i32, i32
  }
  func.func @transform_6(%arg0: i32) -> (i32, i32, i32) {
    %c0_i32 = arith.constant 0 : i32
    %c0_i32_0 = arith.constant 0 : i32
    %c0_i32_1 = arith.constant 0 : i32
    return %arg0, %c0_i32, %c0_i32_0 : i32, i32, i32
  }
}

</mosaic_0001>

<llo_original>
// kernel: tpu_custom_call.1
$region0: #{tpu_custom_call.1}
  #allocation0 [shape = 'u32[]', space=smem, size = 0x4, offset = 0x4, fixed_abs, tag = 'smem constant byte address 0x4 - core index']
  #allocation1 [shape = 'u32[72,128]{1,0:T(1,128)}', space=vmem, size = 0x9000, scoped, tag = 'internal scratch']
  #allocation2 [shape = 'f32[2,64]{1,0:T(2,128)}', space=vmem, size = 0x400, scoped, tag = 'scratch operand']
  %s0 = inlined_call_operand.hbm [shape: f32[1,2,64], index: 0, kind: input, shape index: {}]
  %s1 = inlined_call_operand.hbm [shape: f32[2,64], index: 1, kind: input, shape index: {}]
  %s2 = inlined_call_operand.hbm [shape: f32[64,192], index: 2, kind: input, shape index: {}]
  %s3 = inlined_call_operand.vmem [shape: f32[1,192], index: 3, kind: input, shape index: {}]
  %s4 = inlined_call_operand.hbm [shape: f32[32,128], index: 4, kind: input, shape index: {}]
  %s5 = inlined_call_operand.vmem [shape: f32[1,128], index: 5, kind: input, shape index: {}]
  %s6 = inlined_call_operand.hbm [shape: f32[1,2,128], index: 6, kind: output, shape index: {}]
  %s7 = sld [smem:[#allocation0]]
  $region54: #{tpu_custom_call.1} parent=0
    _
  %s9 = ssub.s32 1, %s7
  %s10 = scalar_select 0, %s9, %s7
  $region1: #{tpu_custom_call.1} parent=0
    #allocation3 [shape = 'u8[1024]{0}', space=vmem, size = 0x400, scoped, tag = 'input window, operand 0, single buffered']
    #allocation4 [shape = 's32[1]{0}', space=sflag, size = 0x4, scoped, tag = 'scoped memory for tpu_custom_call.1']
    #allocation5 [shape = 's32[1]{0}', space=sflag, size = 0x4, scoped, tag = 'scoped memory for tpu_custom_call.1']
    #allocation6 [shape = 'u8[1024]{0}', space=vmem, size = 0x400, scoped, tag = 'input window, operand 1, single buffered']
    #allocation7 [shape = 's32[1]{0}', space=sflag, size = 0x4, scoped, tag = 'scoped memory for tpu_custom_call.1']
    #allocation8 [shape = 'u8[65536]{0}', space=vmem, size = 0x10000, scoped, tag = 'input window, operand 2, single buffered']
    #allocation9 [shape = 'u8[16384]{0}', space=vmem, size = 0x4000, scoped, tag = 'input window, operand 4, single buffered']
    #allocation10 [shape = 's32[1]{0}', space=sflag, size = 0x4, scoped, tag = 'scoped memory for tpu_custom_call.1']
    #allocation11 [shape = 'u8[1024]{0}', space=vmem, size = 0x400, scoped, tag = 'output window, operand 0, single buffered']
    %11 = vsyncpa [#allocation4], 0
    %12 = vsyncpa [#allocation7], 0
    %13 = vsyncpa [#allocation10], 0
    %14 = vsyncpa [#allocation5], 0
    // Predicated region
    $region2: #{tpu_custom_call.1} parent=1 // pred_check
      _
    $region3: #{tpu_custom_call.1} parent=1 // pred_check_branch
      %16 = sbr.rel (0) target = $region5
    $region4: #{tpu_custom_call.1} parent=1 // pred_region
      %18 = vsyncadd [#allocation4], 0
      %s20 = sshll.u32 %s0, 4
      %s21 = int_to_ptr.hbm [resolvable:$true] %s20
      %s22 = sshll.u32 [#allocation3], 4
      %s23 = int_to_ptr.vmem [resolvable:$true] %s22
      %25 = dma.hbm_to_vmem [thread:$0]  %s21, 32, %s23, [#allocation4]
    $region5: #{tpu_custom_call.1} parent=1 // pred_fallthru
      _
    // Predicated region
    $region6: #{tpu_custom_call.1} parent=1 // pred_check
      _
    $region7: #{tpu_custom_call.1} parent=1 // pred_check_branch
      %27 = sbr.rel (0) target = $region9
    $region8: #{tpu_custom_call.1} parent=1 // pred_region
      %29 = vsyncadd [#allocation7], 0
      %s31 = sshll.u32 %s1, 4
      %s32 = int_to_ptr.hbm [resolvable:$true] %s31
      %s33 = sshll.u32 [#allocation6], 4
      %s34 = int_to_ptr.vmem [resolvable:$true] %s33
      %36 = dma.hbm_to_vmem [thread:$0]  %s32, 32, %s34, [#allocation7]
    $region9: #{tpu_custom_call.1} parent=1 // pred_fallthru
      _
    // Predicated region
    $region10: #{tpu_custom_call.1} parent=1 // pred_check
      _
    $region11: #{tpu_custom_call.1} parent=1 // pred_check_branch
      %38 = sbr.rel (0) target = $region13
    $region12: #{tpu_custom_call.1} parent=1 // pred_region
      %40 = vsyncadd [#allocation7], 0
      %s41 = sshll.u32 %s2, 4
      %s42 = int_to_ptr.hbm [resolvable:$true] %s41
      %s43 = sshll.u32 [#allocation8], 4
      %s44 = int_to_ptr.vmem [resolvable:$true] %s43
      %49 = dma.hbm_to_vmem [thread:$0]  %s42, 2048, %s44, [#allocation7], 256, 256, 16
    $region13: #{tpu_custom_call.1} parent=1 // pred_fallthru
      _
    // Predicated region
    $region14: #{tpu_custom_call.1} parent=1 // pred_check
      _
    $region15: #{tpu_custom_call.1} parent=1 // pred_check_branch
      %51 = sbr.rel (0) target = $region17
    $region16: #{tpu_custom_call.1} parent=1 // pred_region
      _
    $region17: #{tpu_custom_call.1} parent=1 // pred_fallthru
      _
    // Predicated region
    $region18: #{tpu_custom_call.1} parent=1 // pred_check
      _
    $region19: #{tpu_custom_call.1} parent=1 // pred_check_branch
      %53 = sbr.rel (0) target = $region21
    $region20: #{tpu_custom_call.1} parent=1 // pred_region
      %55 = vsyncadd [#allocation10], 0
      %s56 = sshll.u32 %s4, 4
      %s57 = int_to_ptr.hbm [resolvable:$true] %s56
      %s58 = sshll.u32 [#allocation9], 4
      %s59 = int_to_ptr.vmem [resolvable:$true] %s58
      %64 = dma.hbm_to_vmem [thread:$0]  %s57, 512, %s59, [#allocation10], 128, 128, 8
    $region21: #{tpu_custom_call.1} parent=1 // pred_fallthru
      _
    // Predicated region
    $region22: #{tpu_custom_call.1} parent=1 // pred_check
      _
    $region23: #{tpu_custom_call.1} parent=1 // pred_check_branch
      %66 = sbr.rel (0) target = $region25
    $region24: #{tpu_custom_call.1} parent=1 // pred_region
      _
    $region25: #{tpu_custom_call.1} parent=1 // pred_fallthru
      _
    // Predicated region
    $region26: #{tpu_custom_call.1} parent=1 // pred_check
      _
    $region27: #{tpu_custom_call.1} parent=1 // pred_check_branch
      %68 = sbr.rel (0) target = $region29
    $region28: #{tpu_custom_call.1} parent=1 // pred_region
      %70 = dma.done [#allocation4], 32
    $region29: #{tpu_custom_call.1} parent=1 // pred_fallthru
      _
    // Predicated region
    $region30: #{tpu_custom_call.1} parent=1 // pred_check
      _
    $region31: #{tpu_custom_call.1} parent=1 // pred_check_branch
      %72 = sbr.rel (0) target = $region33
    $region32: #{tpu_custom_call.1} parent=1 // pred_region
      %74 = dma.done [#allocation7], 32
    $region33: #{tpu_custom_call.1} parent=1 // pred_fallthru
      _
    // Predicated region
    $region34: #{tpu_custom_call.1} parent=1 // pred_check
      _
    $region35: #{tpu_custom_call.1} parent=1 // pred_check_branch
      %76 = sbr.rel (0) target = $region37
    $region36: #{tpu_custom_call.1} parent=1 // pred_region
      %78 = dma.done [#allocation7], 2048
    $region37: #{tpu_custom_call.1} parent=1 // pred_fallthru
      _
    // Predicated region
    $region38: #{tpu_custom_call.1} parent=1 // pred_check
      _
    $region39: #{tpu_custom_call.1} parent=1 // pred_check_branch
      %80 = sbr.rel (0) target = $region41
    $region40: #{tpu_custom_call.1} parent=1 // pred_region
      %82 = dma.done [#allocation10], 512
    $region41: #{tpu_custom_call.1} parent=1 // pred_fallthru
      _
    %p83 = scmp.eq.s32.totalorder 0, 0
    // Predicated region
    $region42: #{tpu_custom_call.1} parent=1 // pred_check
      %p84 = pneg %p83
    $region43: #{tpu_custom_call.1} parent=1 // pred_check_branch
      %86 = sbr.rel (%p84) target = $region45
    $region44: #{tpu_custom_call.1} parent=1 // pred_region
      %v87 = vld [vmem:[#allocation6] sm:$0x3]
      %vm88 = vcmask 517120
      %89 = vst.msk [vmem:[#allocation2] sm:$0x3] %vm88, %v87
    $region45: #{tpu_custom_call.1} parent=1 // pred_fallthru
      _
    %v90 = vld [vmem:[#allocation3] sm:$0x3]
    %v91 = vld [vmem:[#allocation2] sm:$0x3]
    %v92 = vadd.f32 %v90, %v91
    %v93 = vld [vmem:[#allocation8] sm:$0xff]
    %v94 = vld [vmem:[#allocation8 + $0x8] sm:$0xff]
    %v95 = vld [vmem:[#allocation8 + $0x10] sm:$0xff]
    %v96 = vld [vmem:[#allocation8 + $0x18] sm:$0xff]
    %v97 = vld [vmem:[#allocation8 + $0x20] sm:$0xff]
    %v98 = vld [vmem:[#allocation8 + $0x28] sm:$0xff]
    %v99 = vld [vmem:[#allocation8 + $0x30] sm:$0xff]
    %v100 = vld [vmem:[#allocation8 + $0x38] sm:$0xff]
    %v101 = vld [vmem:[#allocation8 + $0x40] sm:$0xff]
    %v102 = vld [vmem:[#allocation8 + $0x48] sm:$0xff]
    %v103 = vld [vmem:[#allocation8 + $0x50] sm:$0xff]
    %v104 = vld [vmem:[#allocation8 + $0x58] sm:$0xff]
    %v105 = vld [vmem:[#allocation8 + $0x60] sm:$0xff]
    %v106 = vld [vmem:[#allocation8 + $0x68] sm:$0xff]
    %v107 = vld [vmem:[#allocation8 + $0x70] sm:$0xff]
    %v108 = vld [vmem:[#allocation8 + $0x78] sm:$0xff]
    %v109 = vld [vmem:[%s3] sm:$0x3]
    %v111 = vperm.slane %v109, 0
    %v112 = vperm.slane %v109, 1
    %vm115 = vcmask 523264
    %v117 = vsel %vm115, %v92, 0
    %119 = vmatpush.msra.mxu0 0.0
    %120 = vmatpush.msra.mxu0 0.0
    %121 = vmatpush.msra.mxu0 0.0
    %122 = vmatpush.msra.mxu0 0.0
    %123 = vmatpush.msra.mxu0 0.0
    %124 = vmatpush.msra.mxu0 0.0
    %125 = vmatpush.msra.mxu0 0.0
    %126 = vmatpush.msra.mxu0 0.0
    %127 = vmatpush.msra.mxu0 %v107
    %128 = vmatpush.msra.mxu0 %v105
    %129 = vmatpush.msra.mxu0 %v103
    %130 = vmatpush.msra.mxu0 %v101
    %131 = vmatpush.msra.mxu0 %v99
    %132 = vmatpush.msra.mxu0 %v97
    %133 = vmatpush.msra.mxu0 %v95
    %134 = vmatpush.msra.mxu0 %v93
    %135 = vmatmul.f32.gmra.mxu0 %v117
    %v136 = vpop.f32.mrf.mxu0
    %v137 = vadd.f32 %v111, %v136
    %138 = vdwg.mxu0
    %139 = vmatpush.msra.mxu0 0.0
    %140 = vmatpush.msra.mxu0 0.0
    %141 = vmatpush.msra.mxu0 0.0
    %142 = vmatpush.msra.mxu0 0.0
    %143 = vmatpush.msra.mxu0 0.0
    %144 = vmatpush.msra.mxu0 0.0
    %145 = vmatpush.msra.mxu0 0.0
    %146 = vmatpush.msra.mxu0 0.0
    %147 = vmatpush.msra.mxu0 %v108
    %148 = vmatpush.msra.mxu0 %v106
    %149 = vmatpush.msra.mxu0 %v104
    %150 = vmatpush.msra.mxu0 %v102
    %151 = vmatpush.msra.mxu0 %v100
    %152 = vmatpush.msra.mxu0 %v98
    %153 = vmatpush.msra.mxu0 %v96
    %154 = vmatpush.msra.mxu0 %v94
    %155 = vmatmul.f32.gmra.mxu0 %v117
    %v156 = vpop.f32.mrf.mxu0
    %v157 = vadd.f32 %v112, %v156
    %158 = vdwg.mxu0
    %161 = vrot.lane.b32.xlu0 %v137, 32
    %v162 = vpop.permute.xlu0 %161
    %163 = vrot.lane.b32.xlu0 %v157, 32
    %v164 = vpop.permute.xlu0 %163
    %vm165 = vcmask 261120
    %v166 = vsel %vm165, %v162, %v164
    %v168 = vadd.f32 %v137, %v166
    %v169 = vxor.u32 %v168, 2147483648
    %v170 = vmul.f32 %v169, 1.442695
    %v171 = vpow.pop %v170
    %v172 = vadd.f32 %v171, 1.0
    %v173 = vrcp.pop %v172
    %v174 = vmul.f32 %v172, %v173
    %v175 = vsub.f32 1.0, %v174
    %v176 = vmul.f32 %v173, %v175
    %v177 = vadd.f32 %v173, %v176
    %vm178 = vweird.f32 %v172
    %vm179 = vweird.f32 %v173
    %vm180 = vmor %vm178, %vm179
    %v181 = vsel %vm180, %v173, %v177
    %v182 = vand.u32 2147483647, %v172
    %vm183 = vcmp.eq.f32.partialorder %v182, 8.507059e+37
    %v184 = vand.u32 %v172, 2147483648
    %v185 = vor.u32 1.1754944e-38, %v184
    %v186 = vsel %vm183, %v185, %v181
    %v187 = vmul.f32 1.0, %v186
    %188 = vrot.lane.b32.xlu0 %v157, 96
    %v189 = vpop.permute.xlu0 %188
    %v191 = vmul.f32 %v187, %v189
    %193 = vrot.lane.b32.xlu0 %v191, 64
    %v194 = vpop.permute.xlu0 %193
    %v196 = vadd.f32 %v137, %v194
    %v197 = vtanh.pop %v196
    %v198 = vsub.f32 1.0, %v187
    %200 = vrot.lane.b32.xlu0 %v197, 96
    %v201 = vpop.permute.xlu0 %200
    %v203 = vmul.f32 %v198, %v201
    %v204 = vmul.f32 %v187, %v92
    %v205 = vadd.f32 %v203, %v204
    %v206 = vld [vmem:[#allocation9] sm:$0xff]
    %v207 = vld [vmem:[#allocation9 + $0x8] sm:$0xff]
    %v208 = vld [vmem:[#allocation9 + $0x10] sm:$0xff]
    %v209 = vld [vmem:[#allocation9 + $0x18] sm:$0xff]
    %v210 = vld [vmem:[%s5] sm:$0x1]
    %v212 = vperm.slane %v210, 0
    %215 = vrot.lane.b32.xlu0 %v205, 96
    %v216 = vpop.permute.xlu0 %215
    %v217 = vsel %vm165, %v216, 0
    %219 = vmatpush.msra.mxu0 0.0
    %220 = vmatpush.msra.mxu0 0.0
    %221 = vmatpush.msra.mxu0 0.0
    %222 = vmatpush.msra.mxu0 0.0
    %223 = vmatpush.msra.mxu0 0.0
    %224 = vmatpush.msra.mxu0 0.0
    %225 = vmatpush.msra.mxu0 0.0
    %226 = vmatpush.msra.mxu0 0.0
    %227 = vmatpush.msra.mxu0 0.0
    %228 = vmatpush.msra.mxu0 0.0
    %229 = vmatpush.msra.mxu0 0.0
    %230 = vmatpush.msra.mxu0 0.0
    %231 = vmatpush.msra.mxu0 %v209
    %232 = vmatpush.msra.mxu0 %v208
    %233 = vmatpush.msra.mxu0 %v207
    %234 = vmatpush.msra.mxu0 %v206
    %235 = vmatmul.f32.gmra.mxu0 %v217
    %v236 = vpop.f32.mrf.mxu0
    %v237 = vadd.f32 %v212, %v236
    %238 = vdwg.mxu0
    %vm239 = vcmask 517120
    %240 = vst.msk [vmem:[#allocation2] sm:$0x3] %vm239, %v237
    %241 = vst [vmem:[#allocation11] sm:$0x3] %v237
    // Predicated region
    $region46: #{tpu_custom_call.1} parent=1 // pred_check
      _
    $region47: #{tpu_custom_call.1} parent=1 // pred_check_branch
      %243 = sbr.rel (0) target = $region49
    $region48: #{tpu_custom_call.1} parent=1 // pred_region
      %245 = vsyncadd [#allocation5], 0
      %s247 = sshll.u32 [#allocation11], 4
      %s248 = int_to_ptr.vmem [resolvable:$true] %s247
      %s249 = sshll.u32 %s6, 4
      %s250 = int_to_ptr.hbm [resolvable:$true] %s249
      %252 = dma.vmem_to_hbm [thread:$0]  %s248, 32, %s250, [#allocation5]
    $region49: #{tpu_custom_call.1} parent=1 // pred_fallthru
      _
    // Predicated region
    $region50: #{tpu_custom_call.1} parent=1 // pred_check
      _
    $region51: #{tpu_custom_call.1} parent=1 // pred_check_branch
      %254 = sbr.rel (0) target = $region53
    $region52: #{tpu_custom_call.1} parent=1 // pred_region
      %256 = dma.done [#allocation5], 32
    $region53: #{tpu_custom_call.1} parent=1 // pred_fallthru
      _
    %257 = vsyncpa [#allocation4], 1
    %258 = vsyncpa [#allocation7], 1
    %259 = vsyncpa [#allocation10], 1
    %260 = vsyncpa [#allocation5], 1

</llo_original>
